<compile_context>
chip_gen: v7x
topology: tpu7x:2x2x1
jax: 0.10.0
libtpu: 0.0.40
codegen_flags: <defaults>
</compile_context>

<pallas_src>
import functools

import jax
import jax.numpy as jnp
from jax import lax
from jax.experimental import pallas as pl
from jax.experimental.pallas import tpu as pltpu

ALPHA = 0.25
GAMMA = 2.0  # fixed at 2 -> (1 - p) ** 2 lowers to a single VPU multiply


def _wfl_kernel(logits_ref, labels_ref, acc_ref, out_ref,
                focal_acc, inva_acc, *, total_rows):
    step = pl.program_id(0)
    n_steps = pl.num_programs(0)

    @pl.when(step == 0)
    def _():
        focal_acc[...] = jnp.zeros_like(focal_acc)
        inva_acc[...] = jnp.zeros_like(inva_acc)

    # Upcast only after the (possibly bf16) tile is already in VMEM.
    logits = logits_ref[...].astype(jnp.float32)      # (TB, C)
    labels = labels_ref[...]                          # (TB, 1) i32
    acc = acc_ref[...].astype(jnp.float32)            # (1, C)

    tb, c = logits.shape

    # Mask rows of the (padded) last tile that fall past the true batch size.
    row_ids = step * tb + lax.broadcasted_iota(jnp.int32, (tb, 1), 0)
    row_valid = row_ids < total_rows                  # (TB, 1) bool

    # One-hot of the true class (gather via compare; no dynamic gather on TPU).
    col_ids = lax.broadcasted_iota(jnp.int32, (tb, c), 1)
    onehot = col_ids == labels                        # (TB, C) bool

    # --- CrossEntropyLoss(reduction='none'):  lse - logit[label] ---
    m = jnp.max(logits, axis=-1, keepdims=True)
    lse = m + jnp.log(jnp.sum(jnp.exp(logits - m), axis=-1, keepdims=True))
    label_logit = jnp.sum(jnp.where(onehot, logits, 0.0), axis=-1,
                          keepdims=True)
    ce = lse - label_logit                            # (TB, 1)

    # --- focal term ---  gamma == 2 -> square (no pow, no log(0) at p == 1)
    p = jnp.exp(-ce)
    focal_per = ALPHA * jnp.square(1.0 - p) * ce      # (TB, 1)

    # Per-row accuracy weight a_i = accuracies[label_i] (one-hot gather).
    a_i = jnp.sum(jnp.where(onehot, acc, 0.0), axis=-1, keepdims=True)
    inv_a = 1.0 / a_i                                 # (TB, 1)

    # Accumulate the two running sums (padded rows masked out).
    focal_acc[...] += jnp.sum(jnp.where(row_valid, focal_per, 0.0),
                              keepdims=True)
    inva_acc[...] += jnp.sum(jnp.where(row_valid, inv_a, 0.0), keepdims=True)

    @pl.when(step == n_steps - 1)
    def _():
        # Loop-invariant denominator: computed exactly once, at finalize.
        denom = jnp.sum(1.0 / acc, keepdims=True)     # (1, 1)
        b = jnp.float32(total_rows)
        # out = mean( (1/a_i) / denom * mean(focal_per) )
        #     = sum(1/a_i) * sum(focal_per) / (B^2 * denom)
        out_ref[0, 0] = jnp.sum(focal_acc[...] * inva_acc[...]
                                / (b * b * denom))


def weighted_focal_loss(logits, labels, accuracies, *, block_rows=None,
                        vmem_limit_bytes=None):
    """logits: (B, C) float (f32/bf16), labels: (B,) int, accuracies: (C,) -> scalar."""
    B, C = logits.shape
    labels2d = labels.astype(jnp.int32).reshape(B, 1)
    acc2d = accuracies.astype(jnp.float32).reshape(1, C)

    itemsize = jnp.dtype(logits.dtype).itemsize
    if block_rows is None:
        # ~8 MiB per logits tile: double-buffered this fits the 32 MiB default
        # scoped VMEM on every generation (incl. v7x's 64 MiB physical VMEM).
        target_bytes = 8 * 1024 * 1024
        block_rows = max(8, target_bytes // max(C * itemsize, 1))
        block_rows = min(block_rows, 2048)
    if block_rows >= B:
        tb = B                                # full batch in one tile
    else:
        tb = max(8, (block_rows // 8) * 8)    # sublane (8) alignment
    num_tiles = pl.cdiv(B, tb)

    kernel = functools.partial(_wfl_kernel, total_rows=B)

    cost = pl.CostEstimate(
        flops=10 * B * C,
        transcendentals=B * C + 3 * B,        # exp in lse, log, exp(-ce)
        bytes_accessed=B * C * itemsize + B * 4 + C * 4 + 4,
    )

    out = pl.pallas_call(
        kernel,
        out_shape=jax.ShapeDtypeStruct((1, 1), jnp.float32),
        grid=(num_tiles,),
        in_specs=[
            pl.BlockSpec((tb, C), lambda i: (i, 0)),     # logits tile (pipelined)
            pl.BlockSpec((tb, 1), lambda i: (i, 0)),     # labels tile
            pl.BlockSpec((1, C), lambda i: (0, 0)),      # accuracies (resident)
        ],
        out_specs=pl.BlockSpec(memory_space=pltpu.SMEM),  # scalar result
        scratch_shapes=[
            pltpu.VMEM((1, 1), jnp.float32),             # running sum focal_per
            pltpu.VMEM((1, 1), jnp.float32),             # running sum 1/a_i
        ],
        compiler_params=pltpu.CompilerParams(
            # accumulator carried across batch tiles -> sequential axis
            dimension_semantics=("arbitrary",),
            vmem_limit_bytes=vmem_limit_bytes,
        ),
        cost_estimate=cost,
    )(logits, labels2d, acc2d)
    return out[0, 0]


def _reference(logits, labels, accuracies):
    # pure-JAX reference mirroring the PyTorch semantics
    logits = logits.astype(jnp.float32)
    lse = jax.nn.logsumexp(logits, axis=-1)
    ce = lse - jnp.take_along_axis(logits, labels[:, None], axis=-1)[:, 0]
    p = jnp.exp(-ce)
    focal = jnp.mean(ALPHA * (1.0 - p) ** GAMMA * ce)
    a_i = accuracies[labels]
    denom = jnp.sum(1.0 / accuracies)
    return jnp.mean(1.0 / a_i / denom * focal)


if __name__ == "__main__":
    key = jax.random.PRNGKey(0)
    k1, k2 = jax.random.split(key)

    # B deliberately NOT a multiple of the tile size -> exercises the padded
    # last tile + row masking; block_rows=32 -> 4 grid steps of accumulation.
    B, C = 100, 20
    logits = jax.random.normal(k1, (B, C), dtype=jnp.float32)
    labels = jax.random.randint(k2, (B,), 0, C, dtype=jnp.int32)
    # deterministic per-class "accuracies" in (0, 1]
    accuracies = 0.5 + 0.5 * (jnp.arange(C, dtype=jnp.float32) + 1.0) / C

    # float32 path
    out = weighted_focal_loss(logits, labels, accuracies, block_rows=32)
    out = jax.block_until_ready(out)
    ref = _reference(logits, labels, accuracies)
    assert jnp.allclose(out, ref, rtol=1e-5, atol=1e-6), (out, ref)

    # native bf16 path (no wrapper-side upcast; kernel upcasts in VMEM)
    logits_bf16 = logits.astype(jnp.bfloat16)
    out_bf16 = weighted_focal_loss(logits_bf16, labels, accuracies,
                                   block_rows=32)
    out_bf16 = jax.block_until_ready(out_bf16)
    ref_bf16 = _reference(logits_bf16.astype(jnp.float32), labels, accuracies)
    assert jnp.allclose(out_bf16, ref_bf16, rtol=1e-4, atol=1e-6), (
        out_bf16, ref_bf16)

    print("KERNEL_OK")
</pallas_src>

<mosaic_0001>
module attributes {stable_mosaic.version = 11 : i64} {
  func.func @_wfl_kernel(%arg0: i32, %arg1: memref<32x20xf32, #tpu.memory_space<vmem>>, %arg2: memref<32x1xi32, #tpu.memory_space<vmem>>, %arg3: memref<1x20xf32, #tpu.memory_space<vmem>>, %arg4: memref<1x1xf32, #tpu.memory_space<smem>>, %arg5: memref<1x1xf32, #tpu.memory_space<vmem>>, %arg6: memref<1x1xf32, #tpu.memory_space<vmem>>) attributes {dimension_semantics = [#tpu.dimension_semantics<arbitrary>], iteration_bounds = array<i64: 4>, scalar_prefetch = 0 : i64, scratch_operands = 2 : i64, tpu.core_type = #tpu.core_type<tc>, window_params = [{transform_indices = @transform_0, window_bounds = array<i64: 32, 20>}, {transform_indices = @transform_1, window_bounds = array<i64: 32, 1>}, {pipeline_mode = #tpu.pipeline_mode<synchronous>, transform_indices = @transform_2, window_bounds = array<i64: 1, 20>}, {transform_indices = @transform_3, window_bounds = array<i64: 1, 1>}]} {
    %c0_i32 = arith.constant 0 : i32
    %0 = arith.cmpi eq, %arg0, %c0_i32 : i32
    %1 = arith.extui %0 : i1 to i32
    %c0_i32_0 = arith.constant 0 : i32
    %2 = arith.cmpi ne, %1, %c0_i32_0 : i32
    scf.if %2 {
      %cst_28 = arith.constant 0.000000e+00 : f32
      %69 = vector.broadcast %cst_28 : f32 to vector<1x1xf32>
      %c0_29 = arith.constant 0 : index
      %c0_30 = arith.constant 0 : index
      %70 = vector.load %arg5[%c0_29, %c0_30] : memref<1x1xf32, #tpu.memory_space<vmem>>, vector<1x1xf32>
      tpu.vector_store %arg5[%c0_29, %c0_30], %69 {strides = array<i32>} : memref<1x1xf32, #tpu.memory_space<vmem>>, vector<1x1xf32>,
      %cst_31 = arith.constant 0.000000e+00 : f32
      %71 = vector.broadcast %cst_31 : f32 to vector<1x1xf32>
      %c0_32 = arith.constant 0 : index
      %c0_33 = arith.constant 0 : index
      %72 = vector.load %arg6[%c0_32, %c0_33] : memref<1x1xf32, #tpu.memory_space<vmem>>, vector<1x1xf32>
      tpu.vector_store %arg6[%c0_32, %c0_33], %71 {strides = array<i32>} : memref<1x1xf32, #tpu.memory_space<vmem>>, vector<1x1xf32>,
    } else {
    }
    %c0 = arith.constant 0 : index
    %c0_1 = arith.constant 0 : index
    %3 = vector.load %arg1[%c0, %c0_1] : memref<32x20xf32, #tpu.memory_space<vmem>>, vector<32x20xf32>
    %c0_2 = arith.constant 0 : index
    %c0_3 = arith.constant 0 : index
    %4 = vector.load %arg2[%c0_2, %c0_3] : memref<32x1xi32, #tpu.memory_space<vmem>>, vector<32x1xi32>
    %c0_4 = arith.constant 0 : index
    %c0_5 = arith.constant 0 : index
    %5 = vector.load %arg3[%c0_4, %c0_5] : memref<1x20xf32, #tpu.memory_space<vmem>>, vector<1x20xf32>
    %c32_i32 = arith.constant 32 : i32
    %6 = arith.muli %arg0, %c32_i32 : i32
    %7 = tpu.iota {dimensions = array<i32: 0>} : vector<32x1xi32>
    %8 = vector.broadcast %6 : i32 to vector<32x1xi32>
    %9 = arith.addi %8, %7 : vector<32x1xi32>
    %c100_i32 = arith.constant 100 : i32
    %10 = vector.broadcast %c100_i32 : i32 to vector<32x1xi32>
    %11 = arith.cmpi slt, %9, %10 : vector<32x1xi32>
    %12 = tpu.iota {dimensions = array<i32: 1>} : vector<32x20xi32>
    %13 = vector.broadcast %4 : vector<32x1xi32> to vector<32x20xi32>
    %14 = arith.cmpi eq, %12, %13 : vector<32x20xi32>
    %cst = arith.constant dense<0xFF800000> : vector<32xf32>
    %15 = vector.multi_reduction <maximumf>, %3, %cst [1] : vector<32x20xf32> to vector<32xf32>
    %16 = vector.shape_cast %15 : vector<32xf32> to vector<32x1xf32>
    %17 = vector.broadcast %16 : vector<32x1xf32> to vector<32x20xf32>
    %18 = arith.subf %3, %17 : vector<32x20xf32>
    %19 = math.exp %18 : vector<32x20xf32>
    %cst_6 = arith.constant dense<0.000000e+00> : vector<32xf32>
    %20 = vector.multi_reduction <add>, %19, %cst_6 [1] : vector<32x20xf32> to vector<32xf32>
    %21 = vector.shape_cast %20 : vector<32xf32> to vector<32x1xf32>
    %22 = math.log %21 : vector<32x1xf32>
    %23 = arith.addf %16, %22 : vector<32x1xf32>
    %cst_7 = arith.constant 0.000000e+00 : f32
    %24 = vector.broadcast %cst_7 : f32 to vector<32x20xf32>
    %25 = arith.select %14, %3, %24 : vector<32x20xi1>, vector<32x20xf32>
    %cst_8 = arith.constant dense<0.000000e+00> : vector<32xf32>
    %26 = vector.multi_reduction <add>, %25, %cst_8 [1] : vector<32x20xf32> to vector<32xf32>
    %27 = vector.shape_cast %26 : vector<32xf32> to vector<32x1xf32>
    %28 = arith.subf %23, %27 : vector<32x1xf32>
    %cst_9 = arith.constant 0.000000e+00 : f32
    %29 = vector.broadcast %cst_9 : f32 to vector<32x1xf32>
    %30 = arith.subf %29, %28 : vector<32x1xf32>
    %31 = math.exp %30 : vector<32x1xf32>
    %cst_10 = arith.constant 1.000000e+00 : f32
    %32 = vector.broadcast %cst_10 : f32 to vector<32x1xf32>
    %33 = arith.subf %32, %31 : vector<32x1xf32>
    %34 = arith.mulf %33, %33 : vector<32x1xf32>
    %cst_11 = arith.constant 2.500000e-01 : f32
    %35 = vector.broadcast %cst_11 : f32 to vector<32x1xf32>
    %36 = arith.mulf %35, %34 : vector<32x1xf32>
    %37 = arith.mulf %36, %28 : vector<32x1xf32>
    %cst_12 = arith.constant 0.000000e+00 : f32
    %38 = vector.shape_cast %5 : vector<1x20xf32> to vector<1x20xf32>
    %39 = vector.broadcast %38 : vector<1x20xf32> to vector<32x20xf32>
    %40 = vector.broadcast %cst_12 : f32 to vector<32x20xf32>
    %41 = arith.select %14, %39, %40 : vector<32x20xi1>, vector<32x20xf32>
    %cst_13 = arith.constant dense<0.000000e+00> : vector<32xf32>
    %42 = vector.multi_reduction <add>, %41, %cst_13 [1] : vector<32x20xf32> to vector<32xf32>
    %43 = vector.shape_cast %42 : vector<32xf32> to vector<32x1xf32>
    %cst_14 = arith.constant 1.000000e+00 : f32
    %44 = vector.broadcast %cst_14 : f32 to vector<32x1xf32>
    %45 = arith.divf %44, %43 : vector<32x1xf32>
    %c0_15 = arith.constant 0 : index
    %c0_16 = arith.constant 0 : index
    %46 = vector.load %arg5[%c0_15, %c0_16] : memref<1x1xf32, #tpu.memory_space<vmem>>, vector<1x1xf32>
    %cst_17 = arith.constant 0.000000e+00 : f32
    %47 = vector.broadcast %cst_17 : f32 to vector<32x1xf32>
    %48 = arith.select %11, %37, %47 : vector<32x1xi1>, vector<32x1xf32>
    %49 = vector.shape_cast %48 : vector<32x1xf32> to vector<1x32x1xf32>
    %cst_18 = arith.constant dense<0.000000e+00> : vector<1xf32>
    %50 = vector.multi_reduction <add>, %49, %cst_18 [1, 2] : vector<1x32x1xf32> to vector<1xf32>
    %51 = vector.shape_cast %50 : vector<1xf32> to vector<1x1x1xf32>
    %52 = vector.extract %51[0, 0, 0] : f32 from vector<1x1x1xf32>
    %53 = vector.broadcast %52 : f32 to vector<1x1xf32>
    %54 = arith.addf %46, %53 : vector<1x1xf32>
    %c0_19 = arith.constant 0 : index
    %c0_20 = arith.constant 0 : index
    %55 = vector.load %arg5[%c0_19, %c0_20] : memref<1x1xf32, #tpu.memory_space<vmem>>, vector<1x1xf32>
    tpu.vector_store %arg5[%c0_19, %c0_20], %54 {strides = array<i32>} : memref<1x1xf32, #tpu.memory_space<vmem>>, vector<1x1xf32>,
    %c0_21 = arith.constant 0 : index
    %c0_22 = arith.constant 0 : index
    %56 = vector.load %arg6[%c0_21, %c0_22] : memref<1x1xf32, #tpu.memory_space<vmem>>, vector<1x1xf32>
    %cst_23 = arith.constant 0.000000e+00 : f32
    %57 = vector.broadcast %cst_23 : f32 to vector<32x1xf32>
    %58 = arith.select %11, %45, %57 : vector<32x1xi1>, vector<32x1xf32>
    %59 = vector.shape_cast %58 : vector<32x1xf32> to vector<1x32x1xf32>
    %cst_24 = arith.constant dense<0.000000e+00> : vector<1xf32>
    %60 = vector.multi_reduction <add>, %59, %cst_24 [1, 2] : vector<1x32x1xf32> to vector<1xf32>
    %61 = vector.shape_cast %60 : vector<1xf32> to vector<1x1x1xf32>
    %62 = vector.extract %61[0, 0, 0] : f32 from vector<1x1x1xf32>
    %63 = vector.broadcast %62 : f32 to vector<1x1xf32>
    %64 = arith.addf %56, %63 : vector<1x1xf32>
    %c0_25 = arith.constant 0 : index
    %c0_26 = arith.constant 0 : index
    %65 = vector.load %arg6[%c0_25, %c0_26] : memref<1x1xf32, #tpu.memory_space<vmem>>, vector<1x1xf32>
    tpu.vector_store %arg6[%c0_25, %c0_26], %64 {strides = array<i32>} : memref<1x1xf32, #tpu.memory_space<vmem>>, vector<1x1xf32>,
    %c3_i32 = arith.constant 3 : i32
    %66 = arith.cmpi eq, %arg0, %c3_i32 : i32
    %67 = arith.extui %66 : i1 to i32
    %c0_i32_27 = arith.constant 0 : i32
    %68 = arith.cmpi ne, %67, %c0_i32_27 : i32
    scf.if %68 {
      %cst_28 = arith.constant 1.000000e+00 : f32
      %69 = vector.broadcast %cst_28 : f32 to vector<1x20xf32>
      %70 = arith.divf %69, %5 : vector<1x20xf32>
      %71 = vector.shape_cast %70 : vector<1x20xf32> to vector<1x1x20xf32>
      %cst_29 = arith.constant dense<0.000000e+00> : vector<1xf32>
      %72 = vector.multi_reduction <add>, %71, %cst_29 [1, 2] : vector<1x1x20xf32> to vector<1xf32>
      %73 = vector.shape_cast %72 : vector<1xf32> to vector<1x1x1xf32>
      %74 = vector.extract %73[0, 0, 0] : f32 from vector<1x1x1xf32>
      %75 = vector.broadcast %74 : f32 to vector<1x1xf32>
      %c0_30 = arith.constant 0 : index
      %c0_31 = arith.constant 0 : index
      %76 = vector.load %arg5[%c0_30, %c0_31] : memref<1x1xf32, #tpu.memory_space<vmem>>, vector<1x1xf32>
      %c0_32 = arith.constant 0 : index
      %c0_33 = arith.constant 0 : index
      %77 = vector.load %arg6[%c0_32, %c0_33] : memref<1x1xf32, #tpu.memory_space<vmem>>, vector<1x1xf32>
      %78 = arith.mulf %76, %77 : vector<1x1xf32>
      %cst_34 = arith.constant 1.000000e+02 : f32
      %cst_35 = arith.constant 1.000000e+02 : f32
      %79 = arith.mulf %cst_34, %cst_35 : f32
      %80 = vector.broadcast %79 : f32 to vector<1x1xf32>
      %81 = arith.mulf %80, %75 : vector<1x1xf32>
      %82 = arith.divf %78, %81 : vector<1x1xf32>
      %83 = vector.shape_cast %82 : vector<1x1xf32> to vector<1x1x1xf32>
      %cst_36 = arith.constant dense<0.000000e+00> : vector<1xf32>
      %84 = vector.multi_reduction <add>, %83, %cst_36 [1, 2] : vector<1x1x1xf32> to vector<1xf32>
      %85 = vector.shape_cast %84 : vector<1xf32> to vector<1x1x1xf32>
      %86 = vector.extract %85[0, 0, 0] : f32 from vector<1x1x1xf32>
      %c0_37 = arith.constant 0 : index
      %c0_38 = arith.constant 0 : index
      %87 = memref.load %arg4[%c0_37, %c0_38] : memref<1x1xf32, #tpu.memory_space<smem>>
      memref.store %86, %arg4[%c0_37, %c0_38] : memref<1x1xf32, #tpu.memory_space<smem>>
    } else {
    }
    return
  }
  func.func @transform_0(%arg0: i32) -> (i32, i32) {
    %c0_i32 = arith.constant 0 : i32
    %c0_i32_0 = arith.constant 0 : i32
    return %arg0, %c0_i32 : i32, i32
  }
  func.func @transform_1(%arg0: i32) -> (i32, i32) {
    %c0_i32 = arith.constant 0 : i32
    %c0_i32_0 = arith.constant 0 : i32
    return %arg0, %c0_i32 : i32, i32
  }
  func.func @transform_2(%arg0: i32) -> (i32, i32) {
    %c0_i32 = arith.constant 0 : i32
    %c0_i32_0 = arith.constant 0 : i32
    %c0_i32_1 = arith.constant 0 : i32
    return %c0_i32, %c0_i32_0 : i32, i32
  }
  func.func @transform_3(%arg0: i32) -> (i32, i32) {
    %c0_i32 = arith.constant 0 : i32
    %c0_i32_0 = arith.constant 0 : i32
    %c0_i32_1 = arith.constant 0 : i32
    return %c0_i32, %c0_i32_0 : i32, i32
  }
}

</mosaic_0001>

<llo_original>
// kernel: tpu_custom_call.1
$region0: #{tpu_custom_call.1}
  #allocation0 [shape = 'u32[]', space=smem, size = 0x4, offset = 0x4, fixed_abs, tag = 'smem constant byte address 0x4 - core index']
  #allocation1 [shape = 'u32[144,128]{1,0:T(1,128)}', space=vmem, size = 0x12000, scoped, tag = 'internal scratch']
  #allocation2 [shape = 'f32[1,1]{1,0:T(1,128)}', space=vmem, size = 0x200, scoped, tag = 'scratch operand']
  #allocation3 [shape = 'f32[1,1]{1,0:T(1,128)}', space=vmem, size = 0x200, scoped, tag = 'scratch operand']
  %s0 = inlined_call_operand.vmem [shape: f32[100,20], index: 0, kind: input, shape index: {}]
  %s1 = inlined_call_operand.vmem [shape: s32[100,1], index: 1, kind: input, shape index: {}]
  %s2 = inlined_call_operand.vmem [shape: f32[1,20], index: 2, kind: input, shape index: {}]
  %s3 = inlined_call_operand.hbm [shape: f32[1,1], index: 3, kind: output, shape index: {}]
  %s4 = sld [smem:[#allocation0]]
  $region53: #{tpu_custom_call.1} parent=0
    _
  %s6 = ssub.s32 1, %s4
  %s7 = scalar_select 0, %s6, %s4
  $region1: #{tpu_custom_call.1} parent=0
    #allocation4 [shape = 'u8[512]{0}', space=smem, size = 0x200, scoped, tag = 'output window, operand 0, single buffered']
    #allocation5 [shape = 's32[2]{0}', space=sflag, size = 0x8, scoped, tag = 'scoped memory for tpu_custom_call.1']
    %8 = vsyncpa [#allocation5], 0
    loop: start=0, step=1, limit=6
    $region2: #{tpu_custom_call.1} parent=1 // loop_pre_header
      _
    $region3: #{tpu_custom_call.1} parent=1 // loop_header
      %s10 = sphi 0, %s14
      %p11 = scmp.ge.s32.totalorder %s10, 6
      %s20 = sphi 0, %s22
      %s23 = sphi 0, %s20
      %s24 = sphi 0, %s23
      %s40 = sphi 0, %s24
      %s46 = sphi 0, %s48
      %s49 = sphi 0, %s46
      %s50 = sphi 0, %s49
      %s66 = sphi 0, %s50
      %s70 = sphi 0, %s70
      %s72 = sphi 0, %s70
      %s73 = sphi 0, %s72
      %s87 = sphi 0, %s73
      %s91 = sphi 0, %s91
      %s93 = sphi 0, %s91
      %s94 = sphi 0, %s93
      %s108 = sphi 0, %s94
    $region4: #{tpu_custom_call.1} parent=1 // loop_header_branch
      %13 = sbr.rel (%p11) target = $region8
    $region5: #{tpu_custom_call.1} parent=1 // loop_body
      %s15 = ssub.s32 %s10, 1
      %s16 = ssub.s32 %s10, 2
      %s17 = sadd.s32 %s10, 1
      %s18 = ssub.s32 %s10, %s17
      %p19 = scmp.eq.s32.totalorder %s18, 0
      %s21 = sadd.s32 %s20, 1
      %s22 = scalar_select %p19, %s20, %s21
      %p25 = pneg %p19
      %p26 = scmp.eq.s32.totalorder %s10, 3
      %p27 = por %p25, %p26
      %p28 = scmp.ne.s32.totalorder %s20, %s23
      %p29 = scmp.eq.s32.totalorder %s10, 0
      %p30 = por %p28, %p29
      %p31 = scmp.ne.s32.totalorder %s20, %s23
      %p32 = scmp.eq.s32.totalorder %s15, 3
      %p33 = por %p31, %p32
      %p34 = scmp.ne.s32.totalorder %s23, %s24
      %p35 = scmp.eq.s32.totalorder %s15, 0
      %p36 = por %p34, %p35
      %p37 = scmp.ne.s32.totalorder %s23, %s24
      %p38 = scmp.eq.s32.totalorder %s16, 3
      %p39 = por %p37, %p38
      %p41 = scmp.ne.s32.totalorder %s24, %s40
      %p42 = scmp.eq.s32.totalorder %s16, 0
      %p43 = por %p41, %p42
      %s44 = ssub.s32 %s10, %s17
      %p45 = scmp.eq.s32.totalorder %s44, 0
      %s47 = sadd.s32 %s46, 1
      %s48 = scalar_select %p45, %s46, %s47
      %p51 = pneg %p45
      %p52 = scmp.eq.s32.totalorder %s10, 3
      %p53 = por %p51, %p52
      %p54 = scmp.ne.s32.totalorder %s46, %s49
      %p55 = scmp.eq.s32.totalorder %s10, 0
      %p56 = por %p54, %p55
      %p57 = scmp.ne.s32.totalorder %s46, %s49
      %p58 = scmp.eq.s32.totalorder %s15, 3
      %p59 = por %p57, %p58
      %p60 = scmp.ne.s32.totalorder %s49, %s50
      %p61 = scmp.eq.s32.totalorder %s15, 0
      %p62 = por %p60, %p61
      %p63 = scmp.ne.s32.totalorder %s49, %s50
      %p64 = scmp.eq.s32.totalorder %s16, 3
      %p65 = por %p63, %p64
      %p67 = scmp.ne.s32.totalorder %s50, %s66
      %p68 = scmp.eq.s32.totalorder %s16, 0
      %p69 = por %p67, %p68
      %s71 = sadd.s32 %s70, 1
      %p74 = scmp.eq.s32.totalorder %s10, 3
      %p75 = scmp.ne.s32.totalorder %s70, %s72
      %p76 = scmp.eq.s32.totalorder %s10, 0
      %p77 = por %p75, %p76
      %p78 = scmp.ne.s32.totalorder %s70, %s72
      %p79 = scmp.eq.s32.totalorder %s15, 3
      %p80 = por %p78, %p79
      %p81 = scmp.ne.s32.totalorder %s72, %s73
      %p82 = scmp.eq.s32.totalorder %s15, 0
      %p83 = por %p81, %p82
      %p84 = scmp.ne.s32.totalorder %s72, %s73
      %p85 = scmp.eq.s32.totalorder %s16, 3
      %p86 = por %p84, %p85
      %p88 = scmp.ne.s32.totalorder %s73, %s87
      %p89 = scmp.eq.s32.totalorder %s16, 0
      %p90 = por %p88, %p89
      %s92 = sadd.s32 %s91, 1
      %p95 = scmp.eq.s32.totalorder %s10, 3
      %p96 = scmp.ne.s32.totalorder %s91, %s93
      %p97 = scmp.eq.s32.totalorder %s10, 0
      %p98 = por %p96, %p97
      %p99 = scmp.ne.s32.totalorder %s91, %s93
      %p100 = scmp.eq.s32.totalorder %s15, 3
      %p101 = por %p99, %p100
      %p102 = scmp.ne.s32.totalorder %s93, %s94
      %p103 = scmp.eq.s32.totalorder %s15, 0
      %p104 = por %p102, %p103
      %p105 = scmp.ne.s32.totalorder %s93, %s94
      %p106 = scmp.eq.s32.totalorder %s16, 3
      %p107 = por %p105, %p106
      %p109 = scmp.ne.s32.totalorder %s94, %s108
      %p110 = scmp.eq.s32.totalorder %s16, 0
      %p111 = por %p109, %p110
      %p112 = scmp.le.s32.totalorder 1, %s10
      %p113 = scmp.lt.s32.totalorder %s10, 5
      %p114 = pnand %p112, %p113
      %p115 = pneg %p114
      // Predicated region
      $region9: #{tpu_custom_call.1} parent=5 // pred_check
        _
      $region10: #{tpu_custom_call.1} parent=5 // pred_check_branch
        %117 = sbr.rel (%p114) target = $region12
      $region11: #{tpu_custom_call.1} parent=5 // pred_region
        %s118 = ssub.s32 %s10, 1
        // Predicated region
        $region13: #{tpu_custom_call.1} parent=11 // pred_check
          %p119 = pneg %p83
        $region14: #{tpu_custom_call.1} parent=11 // pred_check_branch
          %121 = sbr.rel (%p119) target = $region16
        $region15: #{tpu_custom_call.1} parent=11 // pred_region
          _
        $region16: #{tpu_custom_call.1} parent=11 // pred_fallthru
          _
      $region12: #{tpu_custom_call.1} parent=5 // pred_fallthru
        _
      %p122 = scmp.lt.s32.totalorder %s10, 4
      // Predicated region
      $region17: #{tpu_custom_call.1} parent=5 // pred_check
        %p123 = pneg %p122
      $region18: #{tpu_custom_call.1} parent=5 // pred_check_branch
        %125 = sbr.rel (%p123) target = $region20
      $region19: #{tpu_custom_call.1} parent=5 // pred_region
        // Predicated region
        $region21: #{tpu_custom_call.1} parent=19 // pred_check
          %p126 = pneg %p30
        $region22: #{tpu_custom_call.1} parent=19 // pred_check_branch
          %128 = sbr.rel (%p126) target = $region24
        $region23: #{tpu_custom_call.1} parent=19 // pred_region
          %s129 = smul.u32 4, %s10
          %s130 = ssub.s32 13, %s129
          %p131 = scmp.lt.s32.totalorder %s130, 4
          %s132 = scalar_select %p131, %s130, 4
          %s133 = smul.u32 128, %s132
          %p134 = scmp.lt.s32.totalorder %s129, 12
          %s135 = scalar_select %p134, %s129, 12
          %s136 = smul.addr %s135, 8
          %s137 = scalar_lea.vmem %s0, %s136
          %s138 = smul.u32 4, %s10
          %s139 = ssub.s32 13, %s138
          %p140 = scmp.lt.s32.totalorder %s139, 4
          %s141 = scalar_select %p140, %s139, 4
          %s142 = smul.u32 128, %s141
        $region24: #{tpu_custom_call.1} parent=19 // pred_fallthru
          _
        // Predicated region
        $region25: #{tpu_custom_call.1} parent=19 // pred_check
          %p143 = pneg %p56
        $region26: #{tpu_custom_call.1} parent=19 // pred_check_branch
          %145 = sbr.rel (%p143) target = $region28
        $region27: #{tpu_custom_call.1} parent=19 // pred_region
          %s146 = smul.u32 4, %s10
          %s147 = ssub.s32 13, %s146
          %p148 = scmp.lt.s32.totalorder %s147, 4
          %s149 = scalar_select %p148, %s147, 4
          %s150 = smul.u32 128, %s149
          %p151 = scmp.lt.s32.totalorder %s146, 12
          %s152 = scalar_select %p151, %s146, 12
          %s153 = smul.addr %s152, 8
          %s154 = scalar_lea.vmem %s1, %s153
          %s155 = smul.u32 4, %s10
          %s156 = ssub.s32 13, %s155
          %p157 = scmp.lt.s32.totalorder %s156, 4
          %s158 = scalar_select %p157, %s156, 4
          %s159 = smul.u32 128, %s158
        $region28: #{tpu_custom_call.1} parent=19 // pred_fallthru
          _
      $region20: #{tpu_custom_call.1} parent=5 // pred_fallthru
        _
      %p160 = scmp.le.s32.totalorder 1, %s10
      %p161 = scmp.lt.s32.totalorder %s10, 5
      %p162 = pnand %p160, %p161
      %p163 = pneg %p162
      // Predicated region
      $region29: #{tpu_custom_call.1} parent=5 // pred_check
        _
      $region30: #{tpu_custom_call.1} parent=5 // pred_check_branch
        %165 = sbr.rel (%p162) target = $region32
      $region31: #{tpu_custom_call.1} parent=5 // pred_region
        %s166 = ssub.s32 %s10, 1
        %s167 = smul.u32 4, %s15
        %s168 = ssub.s32 13, %s167
        %p169 = scmp.lt.s32.totalorder %s168, 4
        %s170 = scalar_select %p169, %s168, 4
        %s171 = smul.u32 128, %s170
        %p172 = scmp.lt.s32.totalorder %s167, 12
        %s173 = scalar_select %p172, %s167, 12
        %s174 = smul.addr %s173, 8
        %s175 = scalar_lea.vmem %s0, %s174
        %p176 = pneg %p36
        %p177 = pneg %p33
        %s178 = smul.u32 4, %s15
        %s179 = ssub.s32 13, %s178
        %p180 = scmp.lt.s32.totalorder %s179, 4
        %s181 = scalar_select %p180, %s179, 4
        %s182 = smul.u32 128, %s181
        %p183 = scmp.lt.s32.totalorder %s178, 12
        %s184 = scalar_select %p183, %s178, 12
        %s185 = smul.addr %s184, 8
        %s186 = scalar_lea.vmem %s1, %s185
        %p187 = pneg %p62
        %p188 = pneg %p59
        %p189 = pneg %p83
        %p190 = pneg %p80
        %p191 = pneg %p104
        %p192 = pneg %p101
        %s193 = smul.u32 4, %s15
        %s194 = ssub.s32 13, %s193
        %p195 = scmp.lt.s32.totalorder %s194, 4
        %s196 = scalar_select %p195, %s194, 4
        %s197 = smul.u32 128, %s196
        %p198 = scmp.lt.s32.totalorder %s193, 12
        %s199 = scalar_select %p198, %s193, 12
        %s200 = smul.addr %s199, 8
        %s201 = scalar_lea.vmem %s0, %s200
        %s202 = smul.u32 4, %s15
        %s203 = ssub.s32 13, %s202
        %p204 = scmp.lt.s32.totalorder %s203, 4
        %s205 = scalar_select %p204, %s203, 4
        %s206 = smul.u32 128, %s205
        %s207 = smul.u32 4, %s15
        %s208 = ssub.s32 13, %s207
        %p209 = scmp.lt.s32.totalorder %s208, 4
        %s210 = scalar_select %p209, %s208, 4
        %s211 = smul.u32 128, %s210
        %p212 = scmp.lt.s32.totalorder %s207, 12
        %s213 = scalar_select %p212, %s207, 12
        %s214 = smul.addr %s213, 8
        %s215 = scalar_lea.vmem %s1, %s214
        %s216 = smul.u32 4, %s15
        %s217 = ssub.s32 13, %s216
        %p218 = scmp.lt.s32.totalorder %s217, 4
        %s219 = scalar_select %p218, %s217, 4
        %s220 = smul.u32 128, %s219
        %p221 = scmp.eq.s32.totalorder %s15, 0
        // Predicated region
        $region33: #{tpu_custom_call.1} parent=31 // pred_check
          %p222 = pneg %p221
        $region34: #{tpu_custom_call.1} parent=31 // pred_check_branch
          %224 = sbr.rel (%p222) target = $region36
        $region35: #{tpu_custom_call.1} parent=31 // pred_region
          %vm225 = vcmask 0
          %226 = vst.msk [vmem:[#allocation2] sm:$0x1] %vm225, 0.0
          %227 = vst.msk [vmem:[#allocation3] sm:$0x1] %vm225, 0.0
        $region36: #{tpu_custom_call.1} parent=31 // pred_fallthru
          _
        %v228 = vld [vmem:[%s201] sm:$0xff]
        %v229 = vld [vmem:[%s201 + $0x8] sm:$0xff]
        %v230 = vld [vmem:[%s201 + $0x10] sm:$0xff]
        %v231 = vld [vmem:[%s201 + $0x18] sm:$0xff]
        %v232 = vld [vmem:[%s215] sm:$0xff]
        %v233 = vld [vmem:[%s215 + $0x8] sm:$0xff]
        %v234 = vld [vmem:[%s215 + $0x10] sm:$0xff]
        %v235 = vld [vmem:[%s215 + $0x18] sm:$0xff]
        %v236 = vld [vmem:[%s2] sm:$0x1]
        %s237 = smul.u32 %s15, 32
        %v238 = vlaneseq
        %v239 = vshrl.u32 %v238, 7
        %v240 = vadd.s32 %v239, 8
        %v241 = vadd.s32 %v239, 16
        %v242 = vadd.s32 %v239, 24
        %v243 = vstv %s237
        %v244 = vadd.s32 %v243, %v239
        %v245 = vadd.s32 %v243, %v240
        %v246 = vadd.s32 %v243, %v241
        %v247 = vadd.s32 %v243, %v242
        %vm248 = vcmp.lt.s32.totalorder %v244, 100
        %vm249 = vcmp.lt.s32.totalorder %v245, 100
        %vm250 = vcmp.lt.s32.totalorder %v246, 100
        %vm251 = vcmp.lt.s32.totalorder %v247, 100
        %v252 = vlaneseq
        %v253 = vand.u32 %v252, 127
        %254 = vset.pattern.permute.xlu0 0
        %255 = vperm.xlu0 %254, %v232
        %v256 = vpop.permute.xlu0 %255
        %257 = vset.pattern.permute.xlu0 0
        %258 = vperm.xlu0 %257, %v233
        %v259 = vpop.permute.xlu0 %258
        %260 = vset.pattern.permute.xlu0 0
        %261 = vperm.xlu0 %260, %v234
        %v262 = vpop.permute.xlu0 %261
        %263 = vset.pattern.permute.xlu0 0
        %264 = vperm.xlu0 %263, %v235
        %v265 = vpop.permute.xlu0 %264
        %vm266 = vcmp.eq.s32.totalorder %v253, %v256
        %vm267 = vcmp.eq.s32.totalorder %v253, %v259
        %vm268 = vcmp.eq.s32.totalorder %v253, %v262
        %vm269 = vcmp.eq.s32.totalorder %v253, %v265
        %vm270 = vcmask 162816
        %v271 = vsel %vm270, %v228, -inf
        %272 = vmax.xlane.f32.xlu0 %v271
        %v273 = vpop.xlane.xlu0 %272
        %v274 = vsel %vm270, %v229, -inf
        %275 = vmax.xlane.f32.xlu0 %v274
        %v276 = vpop.xlane.xlu0 %275
        %v277 = vsel %vm270, %v230, -inf
        %278 = vmax.xlane.f32.xlu0 %v277
        %v279 = vpop.xlane.xlu0 %278
        %v280 = vsel %vm270, %v231, -inf
        %281 = vmax.xlane.f32.xlu0 %v280
        %v282 = vpop.xlane.xlu0 %281
        %v283 = vsub.f32 %v228, %v273
        %v284 = vsub.f32 %v229, %v276
        %v285 = vsub.f32 %v230, %v279
        %v286 = vsub.f32 %v231, %v282
        %v287 = vmul.f32 %v283, 1.442695
        %v288 = vpow.pop %v287
        %v289 = vmul.f32 %v284, 1.442695
        %v290 = vpow.pop %v289
        %v291 = vmul.f32 %v285, 1.442695
        %v292 = vpow.pop %v291
        %v293 = vmul.f32 %v286, 1.442695
        %v294 = vpow.pop %v293
        %v295 = vsel %vm270, %v288, 0.0
        %296 = vadd.xlane.f32.xlu0 %v295
        %v297 = vpop.xlane.xlu0 %296
        %v298 = vsel %vm270, %v290, 0.0
        %299 = vadd.xlane.f32.xlu0 %v298
        %v300 = vpop.xlane.xlu0 %299
        %v301 = vsel %vm270, %v292, 0.0
        %302 = vadd.xlane.f32.xlu0 %v301
        %v303 = vpop.xlane.xlu0 %302
        %v304 = vsel %vm270, %v294, 0.0
        %305 = vadd.xlane.f32.xlu0 %v304
        %v306 = vpop.xlane.xlu0 %305
        %v307 = vlog2.pop %v297
        %v308 = vmul.f32 %v307, 0.6931472
        %v309 = vlog2.pop %v300
        %v310 = vmul.f32 %v309, 0.6931472
        %v311 = vlog2.pop %v303
        %v312 = vmul.f32 %v311, 0.6931472
        %v313 = vlog2.pop %v306
        %v314 = vmul.f32 %v313, 0.6931472
        %v315 = vadd.f32 %v273, %v308
        %v316 = vadd.f32 %v276, %v310
        %v317 = vadd.f32 %v279, %v312
        %v318 = vadd.f32 %v282, %v314
        %v319 = vsel %vm266, %v228, 0.0
        %v320 = vsel %vm267, %v229, 0.0
        %v321 = vsel %vm268, %v230, 0.0
        %v322 = vsel %vm269, %v231, 0.0
        %v323 = vsel %vm270, %v319, 0.0
        %324 = vadd.xlane.f32.xlu0 %v323
        %v325 = vpop.xlane.xlu0 %324
        %v326 = vsel %vm270, %v320, 0.0
        %327 = vadd.xlane.f32.xlu0 %v326
        %v328 = vpop.xlane.xlu0 %327
        %v329 = vsel %vm270, %v321, 0.0
        %330 = vadd.xlane.f32.xlu0 %v329
        %v331 = vpop.xlane.xlu0 %330
        %v332 = vsel %vm270, %v322, 0.0
        %333 = vadd.xlane.f32.xlu0 %v332
        %v334 = vpop.xlane.xlu0 %333
        %v335 = vsub.f32 %v315, %v325
        %v336 = vsub.f32 %v316, %v328
        %v337 = vsub.f32 %v317, %v331
        %v338 = vsub.f32 %v318, %v334
        %v339 = vsub.f32 0.0, %v335
        %v340 = vsub.f32 0.0, %v336
        %v341 = vsub.f32 0.0, %v337
        %v342 = vsub.f32 0.0, %v338
        %v343 = vmul.f32 %v339, 1.442695
        %v344 = vpow.pop %v343
        %v345 = vmul.f32 %v340, 1.442695
        %v346 = vpow.pop %v345
        %v347 = vmul.f32 %v341, 1.442695
        %v348 = vpow.pop %v347
        %v349 = vmul.f32 %v342, 1.442695
        %v350 = vpow.pop %v349
        %v351 = vsub.f32 1.0, %v344
        %v352 = vsub.f32 1.0, %v346
        %v353 = vsub.f32 1.0, %v348
        %v354 = vsub.f32 1.0, %v350
        %v355 = vmul.f32 %v351, %v351
        %v356 = vmul.f32 %v352, %v352
        %v357 = vmul.f32 %v353, %v353
        %v358 = vmul.f32 %v354, %v354
        %v359 = vmul.f32 %v355, 0.25
        %v360 = vmul.f32 %v356, 0.25
        %v361 = vmul.f32 %v357, 0.25
        %v362 = vmul.f32 %v358, 0.25
        %v363 = vmul.f32 %v359, %v335
        %v364 = vmul.f32 %v360, %v336
        %v365 = vmul.f32 %v361, %v337
        %v366 = vmul.f32 %v362, %v338
        %v368 = vlaneseq
        %v369 = vshrl.u32 %v368, 7
        %v370 = vsub.s32 0, %v369
        %v371 = vrot.slane %v236, %v370
        %v373 = vsel %vm266, %v371, 0.0
        %v374 = vsel %vm267, %v371, 0.0
        %v375 = vsel %vm268, %v371, 0.0
        %v376 = vsel %vm269, %v371, 0.0
        %v377 = vsel %vm270, %v373, 0.0
        %378 = vadd.xlane.f32.xlu0 %v377
        %v379 = vpop.xlane.xlu0 %378
        %v380 = vsel %vm270, %v374, 0.0
        %381 = vadd.xlane.f32.xlu0 %v380
        %v382 = vpop.xlane.xlu0 %381
        %v383 = vsel %vm270, %v375, 0.0
        %384 = vadd.xlane.f32.xlu0 %v383
        %v385 = vpop.xlane.xlu0 %384
        %v386 = vsel %vm270, %v376, 0.0
        %387 = vadd.xlane.f32.xlu0 %v386
        %v388 = vpop.xlane.xlu0 %387
        %v389 = vrcp.pop %v379
        %v390 = vmul.f32 1.0, %v389
        %v391 = vrcp.pop %v382
        %v392 = vmul.f32 1.0, %v391
        %v393 = vrcp.pop %v385
        %v394 = vmul.f32 1.0, %v393
        %v395 = vrcp.pop %v388
        %v396 = vmul.f32 1.0, %v395
        %v397 = vld [vmem:[#allocation2] sm:$0x1]
        %v398 = vsel %vm248, %v363, 0.0
        %v399 = vsel %vm249, %v364, 0.0
        %v400 = vsel %vm250, %v365, 0.0
        %v401 = vsel %vm251, %v366, 0.0
        %vm402 = vcmask 7168
        %v403 = vsel %vm402, %v398, 0.0
        %v404 = vsel %vm402, %v399, 0.0
        %v405 = vadd.f32 %v403, %v404
        %v406 = vsel %vm402, %v400, 0.0
        %v407 = vadd.f32 %v405, %v406
        %v408 = vsel %vm402, %v401, 0.0
        %v409 = vadd.f32 %v407, %v408
        %410 = vadd.xlane.f32.xlu0 %v409
        %v411 = vpop.xlane.xlu0 %410
        %v412 = vrot.slane %v411, 4
        %v413 = vadd.f32 %v411, %v412
        %v414 = vrot.slane %v413, 2
        %v415 = vadd.f32 %v413, %v414
        %v416 = vrot.slane %v415, 1
        %v417 = vadd.f32 %v415, %v416
        %s418 = vtos %v417
        %v419 = vstv %s418
        %v420 = vadd.f32 %v397, %v419
        %vm421 = vcmask 0
        %422 = vst.msk [vmem:[#allocation2] sm:$0x1] %vm421, %v420
        %v423 = vld [vmem:[#allocation3] sm:$0x1]
        %v424 = vsel %vm248, %v390, 0.0
        %v425 = vsel %vm249, %v392, 0.0
        %v426 = vsel %vm250, %v394, 0.0
        %v427 = vsel %vm251, %v396, 0.0
        %v428 = vsel %vm402, %v424, 0.0
        %v429 = vsel %vm402, %v425, 0.0
        %v430 = vadd.f32 %v428, %v429
        %v431 = vsel %vm402, %v426, 0.0
        %v432 = vadd.f32 %v430, %v431
        %v433 = vsel %vm402, %v427, 0.0
        %v434 = vadd.f32 %v432, %v433
        %435 = vadd.xlane.f32.xlu0 %v434
        %v436 = vpop.xlane.xlu0 %435
        %v437 = vrot.slane %v436, 4
        %v438 = vadd.f32 %v436, %v437
        %v439 = vrot.slane %v438, 2
        %v440 = vadd.f32 %v438, %v439
        %v441 = vrot.slane %v440, 1
        %v442 = vadd.f32 %v440, %v441
        %s443 = vtos %v442
        %v444 = vstv %s443
        %v445 = vadd.f32 %v423, %v444
        %446 = vst.msk [vmem:[#allocation3] sm:$0x1] %vm421, %v445
        %p447 = scmp.eq.s32.totalorder %s15, 3
        // Predicated region
        $region37: #{tpu_custom_call.1} parent=31 // pred_check
          %p448 = pneg %p447
        $region38: #{tpu_custom_call.1} parent=31 // pred_check_branch
          %450 = sbr.rel (%p448) target = $region40
        $region39: #{tpu_custom_call.1} parent=31 // pred_region
          %v451 = vrcp.pop %v236
          %v452 = vmul.f32 1.0, %v451
          %vm453 = vcmask 155648
          %v454 = vsel %vm453, %v452, 0.0
          %455 = vadd.xlane.f32.xlu0 %v454
          %v456 = vpop.xlane.xlu0 %455
          %v457 = vrot.slane %v456, 4
          %v458 = vadd.f32 %v456, %v457
          %v459 = vrot.slane %v458, 2
          %v460 = vadd.f32 %v458, %v459
          %v461 = vrot.slane %v460, 1
          %v462 = vadd.f32 %v460, %v461
          %s463 = vtos %v462
          %v464 = vstv %s463
          %v465 = vld [vmem:[#allocation2] sm:$0x1]
          %v466 = vld [vmem:[#allocation3] sm:$0x1]
          %v467 = vmul.f32 %v465, %v466
          %v468 = vmul.f32 %v464, 10000.0
          %v469 = vrcp.pop %v468
          %v470 = vmul.f32 %v467, %v469
          %v471 = vadd.f32 %v470, 0.0
          %s472 = vtos %v471
          %s473 = scalar_lea.smem [#allocation4], 0
          %474 = sst [smem:[%s473]] %s472
        $region40: #{tpu_custom_call.1} parent=31 // pred_fallthru
          _
        // Predicated region
        $region41: #{tpu_custom_call.1} parent=31 // pred_check
          %p475 = pneg %p101
        $region42: #{tpu_custom_call.1} parent=31 // pred_check_branch
          %477 = sbr.rel (%p475) target = $region44
        $region43: #{tpu_custom_call.1} parent=31 // pred_region
          %s479 = ssub.s32 16, 16
          %480 = vsyncadd [#allocation5], %s479
          %483 = dma.smem_to_hbm [#allocation4], 16, %s3, [#allocation5]
        $region44: #{tpu_custom_call.1} parent=31 // pred_fallthru
          _
        // Predicated region
        $region45: #{tpu_custom_call.1} parent=31 // pred_check
          %p484 = pneg %p101
        $region46: #{tpu_custom_call.1} parent=31 // pred_check_branch
          %486 = sbr.rel (%p484) target = $region48
        $region47: #{tpu_custom_call.1} parent=31 // pred_region
          %487 = dma.done [#allocation5], 16
        $region48: #{tpu_custom_call.1} parent=31 // pred_fallthru
          _
        %488 = sfence
      $region32: #{tpu_custom_call.1} parent=5 // pred_fallthru
        _
      %p489 = scmp.le.s32.totalorder 2, %s10
      // Predicated region
      $region49: #{tpu_custom_call.1} parent=5 // pred_check
        %p490 = pneg %p489
      $region50: #{tpu_custom_call.1} parent=5 // pred_check_branch
        %492 = sbr.rel (%p490) target = $region52
      $region51: #{tpu_custom_call.1} parent=5 // pred_region
        %s493 = ssub.s32 %s10, 2
      $region52: #{tpu_custom_call.1} parent=5 // pred_fallthru
        _
    $region6: #{tpu_custom_call.1} parent=1 // loop_footer
      %s14 = sadd.s32 1, %s10
    $region7: #{tpu_custom_call.1} parent=1 // loop_footer_branch
      %9 = sbr.rel target = $region3
    $region8: #{tpu_custom_call.1} parent=1 // loop_exit
      _
    %494 = vsyncpa [#allocation5], 1
    %s495 = scalar_lea.sflag [#allocation5], 1
    %496 = vsyncpa %s495, 1

</llo_original>
